<compile_context>
chip_gen: v6e
topology: v6e:2x2x1
jax: 0.10.0
libtpu: 0.0.40
codegen_flags: <defaults>
</compile_context>

<pallas_src>
import functools
import math

import jax
import jax.numpy as jnp
from jax import lax
from jax.experimental import pallas as pl
from jax.experimental.pallas import tpu as pltpu


def _round_up(a: int, b: int) -> int:
    return ((a + b - 1) // b) * b


def _vmem_budget_bytes() -> int:
    """~80% of physical VMEM (leaves compiler-scratch headroom on all generations)."""
    cap = None
    try:
        cap = int(getattr(pltpu.get_tpu_info(), "vmem_capacity_bytes", 0)) or None
    except Exception:
        cap = None
    if cap is None:
        cap = 64 << 20  # conservative fallback (v7x per-TC size)
    return int(cap * 0.80)


def _footprint(tile_b: int, tile_n: int, D: int, cbytes: int, obytes: int) -> int:
    """Double-buffered block footprint + in-kernel f32 temporaries."""
    blocks = (
        2 * tile_b * D * cbytes            # x tile
        + 2 * tile_n * D * cbytes          # weight slab
        + 2 * tile_b * tile_n * obytes     # output tile
        + 2 * 8 * tile_n * 4               # winv (sublane-padded (1, tile_n))
        + 2 * 2 * tile_b * 128 * 4         # label + xscale (lane-padded (tile_b, 1))
    )
    temps = 4 * tile_b * tile_n * 4        # dot / scaled / where result / mask
    return blocks + temps


def _select_tiles(B, D, N, cbytes, obytes, budget):
    """Lane-dense class tiles, VMEM-aware + occupancy-aware (>= 2 grid blocks)."""
    tile_n = min(2048, _round_up(N, 128))
    tile_b = min(512, _round_up(B, 8))

    # D-aware VMEM shrink: the double-buffered (tile_n, D) slab dominates for big D.
    # TODO(synk): for absurdly large D (slab > budget even at 8x128 tiles), tile D
    # with a third "arbitrary" grid axis + f32 VMEM accumulator.
    while _footprint(tile_b, tile_n, D, cbytes, obytes) > budget and tile_n > 128:
        tile_n = max(128, _round_up(tile_n // 2, 128))
    while _footprint(tile_b, tile_n, D, cbytes, obytes) > budget and tile_b > 8:
        tile_b = max(8, _round_up(tile_b // 2, 8))

    def _grid(tb, tn):
        return (_round_up(B, tb) // tb) * (_round_up(N, tn) // tn)

    # Occupancy: v7x shards "parallel" grid axes across 2 TensorCores.
    while _grid(tile_b, tile_n) < 2 and (tile_n > 128 or tile_b > 8):
        if tile_n > 128:
            tile_n = max(128, _round_up(tile_n // 2, 128))
        else:
            tile_b = max(8, _round_up(tile_b // 2, 8))
    return tile_b, tile_n


def amsoftmax_kernel(label_ref, xscale_ref, winv_ref, x_ref, w_ref, o_ref,
                     *, s, m, tile_n, class_axis):
    """One (tile_b, tile_n) block of  s * (cosine - m * one_hot(label)).

    cosine is reconstructed post-matmul:  s*cosine = (x @ W.T) * (s/||x||) * (1/||w||).
    """
    j = pl.program_id(class_axis)  # class-tile index

    # Raw (un-normalized) dot product on the MXU, contracting dim 1 of both operands
    # (weight stays in its native (N, D) layout). f32 accumulation.
    dot = lax.dot_general(
        x_ref[...], w_ref[...],
        dimension_numbers=(((1,), (1,)), ((), ())),
        preferred_element_type=jnp.float32,
    )                                                   # (tile_b, tile_n) f32

    # Post-matmul scaling with precomputed inverse norms (s folded into xscale).
    scaled = dot * xscale_ref[...] * winv_ref[...]      # == s * cosine

    # Additive margin on the target class: subtract s*m where column == label.
    target = label_ref[...] - j * tile_n                # (tile_b, 1) int32
    col = lax.broadcasted_iota(jnp.int32, scaled.shape, 1)
    o_ref[...] = jnp.where(col == target, scaled - s * m, scaled).astype(o_ref.dtype)


def amsoftmax_forward(
    x,
    weight,
    label,
    *,
    s=30.0,
    m=0.4,
    tile_b=None,
    tile_n=None,
    compute_dtype=jnp.bfloat16,
    out_dtype=jnp.float32,
):
    """x: (B, D), weight: (N, D) (PyTorch layout), label: (B,) int -> (B, N) out_dtype."""
    B, D = x.shape
    N, Dw = weight.shape
    assert D == Dw

    cbytes = jnp.dtype(compute_dtype).itemsize
    obytes = jnp.dtype(out_dtype).itemsize
    budget = _vmem_budget_bytes()

    if tile_b is None or tile_n is None:
        auto_b, auto_n = _select_tiles(B, D, N, cbytes, obytes, budget)
        tile_b = auto_b if tile_b is None else _round_up(tile_b, 8)
        tile_n = auto_n if tile_n is None else _round_up(tile_n, 128)
    else:
        tile_b = _round_up(tile_b, 8)
        tile_n = _round_up(tile_n, 128)

    b_pad = _round_up(B, tile_b)
    n_pad = _round_up(N, tile_n)
    grid_b = b_pad // tile_b
    grid_n = n_pad // tile_n

    # Inverse norms precomputed once, in f32 (matches F.normalize's eps=1e-12 clamp).
    x_f32 = x.astype(jnp.float32)
    w_f32 = weight.astype(jnp.float32)
    xscale = s / jnp.maximum(
        jnp.sqrt(jnp.sum(x_f32 * x_f32, axis=1, keepdims=True)), 1e-12)    # (B, 1)
    winv = (1.0 / jnp.maximum(
        jnp.sqrt(jnp.sum(w_f32 * w_f32, axis=1)), 1e-12)).reshape(1, N)    # (1, N)

    # Compute-dtype operands (no transpose of the weight); zero padding is sliced off
    # at the end. Padded rows/cols carry zero scale, so no masking is needed.
    x_c = x.astype(compute_dtype)
    w_c = weight.astype(compute_dtype)
    label2d = label.astype(jnp.int32).reshape(B, 1)
    if b_pad != B:
        x_c = jnp.pad(x_c, ((0, b_pad - B), (0, 0)))
        xscale = jnp.pad(xscale, ((0, b_pad - B), (0, 0)))
        label2d = jnp.pad(label2d, ((0, b_pad - B), (0, 0)))
    if n_pad != N:
        w_c = jnp.pad(w_c, ((0, n_pad - N), (0, 0)))
        winv = jnp.pad(winv, ((0, 0), (0, n_pad - N)))

    # Grid ordering: stream the N*D weight exactly once when re-streaming x is cheaper.
    traffic_batch_outer = grid_b * n_pad + b_pad   # (in units of D elements)
    traffic_class_outer = n_pad + grid_n * b_pad
    batch_outer = traffic_batch_outer <= traffic_class_outer

    if batch_outer:
        grid = (grid_b, grid_n)
        class_axis = 1
        row_map = lambda i, j: (i, 0)
        col_map = lambda i, j: (0, j)
        w_map = lambda i, j: (j, 0)
        out_map = lambda i, j: (i, j)
    else:
        grid = (grid_n, grid_b)
        class_axis = 0
        row_map = lambda j, i: (i, 0)
        col_map = lambda j, i: (0, j)
        w_map = lambda j, i: (j, 0)
        out_map = lambda j, i: (i, j)

    footprint = _footprint(tile_b, tile_n, D, cbytes, obytes)
    vmem_limit = max(1 << 20, min(footprint + (4 << 20), budget))

    bytes_accessed = (
        (grid_b if batch_outer else 1) * n_pad * D * cbytes      # weight stream
        + (1 if batch_outer else grid_n) * b_pad * D * cbytes    # x stream
        + b_pad * n_pad * obytes                                  # output
        + b_pad * 8 + n_pad * 4                                   # labels + norms
    )
    cost = pl.CostEstimate(
        flops=2 * b_pad * n_pad * D,
        bytes_accessed=int(bytes_accessed),
        transcendentals=0,
    )

    kernel = functools.partial(
        amsoftmax_kernel, s=float(s), m=float(m), tile_n=tile_n, class_axis=class_axis
    )

    out = pl.pallas_call(
        kernel,
        out_shape=jax.ShapeDtypeStruct((b_pad, n_pad), out_dtype),
        grid_spec=pltpu.PrefetchScalarGridSpec(
            num_scalar_prefetch=0,
            grid=grid,
            in_specs=[
                pl.BlockSpec((tile_b, 1), row_map),      # labels
                pl.BlockSpec((tile_b, 1), row_map),      # s / ||x||
                pl.BlockSpec((1, tile_n), col_map),      # 1 / ||w||
                pl.BlockSpec((tile_b, D), row_map),      # x tile (compute_dtype)
                pl.BlockSpec((tile_n, D), w_map),        # weight slab, native (N, D)
            ],
            out_specs=pl.BlockSpec((tile_b, tile_n), out_map),
        ),
        compiler_params=pltpu.CompilerParams(
            dimension_semantics=("parallel", "parallel"),
            vmem_limit_bytes=int(vmem_limit),
        ),
        cost_estimate=cost,
    )(label2d, xscale, winv, x_c, w_c)

    return out[:B, :N]


def init_amsoftmax_weight(key, in_features, out_features):
    """Deterministic init matching nn.init.xavier_uniform_ on a (out, in) weight."""
    limit = math.sqrt(6.0 / (in_features + out_features))
    return jax.random.uniform(
        key, (out_features, in_features), jnp.float32, -limit, limit
    )


if __name__ == "__main__":
    # Small shapes consistent with the module: batch=16, in_features=32, classes=200
    # (non-multiple of 128 to exercise the class-padding path).
    B, D, N = 16, 32, 200
    s, m = 30.0, 0.4

    key = jax.random.PRNGKey(0)
    kx, kw, kl = jax.random.split(key, 3)
    x = jax.random.normal(kx, (B, D), dtype=jnp.float32)
    weight = init_amsoftmax_weight(kw, D, N)                 # PyTorch layout (N, D)
    label = jax.random.randint(kl, (B,), 0, N, dtype=jnp.int32)

    # Pure-JAX reference (mirrors the PyTorch forward).
    x_n = x / jnp.maximum(jnp.linalg.norm(x, axis=1, keepdims=True), 1e-12)
    w_n = weight / jnp.maximum(jnp.linalg.norm(weight, axis=1, keepdims=True), 1e-12)
    cosine = x_n @ w_n.T
    one_hot = jax.nn.one_hot(label, N, dtype=jnp.float32)
    ref = s * (cosine - m * one_hot)

    # Default config: bf16 MXU stream, f32 output, auto tiles (>= 2 grid blocks).
    out_bf16 = jax.block_until_ready(amsoftmax_forward(x, weight, label, s=s, m=m))
    assert out_bf16.shape == (B, N)
    assert jnp.allclose(out_bf16, ref, atol=0.5, rtol=0.0)

    # f32 compute path with small explicit tiles: exercises batch/class padding and
    # the class-outermost grid ordering (weight streamed once).
    out_f32 = jax.block_until_ready(
        amsoftmax_forward(
            x, weight, label, s=s, m=m, tile_b=8, tile_n=128,
            compute_dtype=jnp.float32,
        )
    )
    assert out_f32.shape == (B, N)
    assert jnp.allclose(out_f32, ref, atol=5e-3, rtol=1e-3)

    # bf16 output path (halves the output write); margin math stays f32 in-kernel.
    out_bf16_out = jax.block_until_ready(
        amsoftmax_forward(x, weight, label, s=s, m=m, out_dtype=jnp.bfloat16)
    )
    assert out_bf16_out.dtype == jnp.bfloat16
    assert jnp.allclose(out_bf16_out.astype(jnp.float32), ref, atol=0.75, rtol=0.0)

    # TODO(synk): the PyTorch multi-GPU `device_id` weight-chunking branch is a CUDA
    # device-placement detail with identical math; only the single-device math is
    # implemented here.
    print("KERNEL_OK")
</pallas_src>

<mosaic_0001>
module attributes {stable_mosaic.version = 11 : i64} {
  func.func @amsoftmax_kernel(%arg0: i32, %arg1: i32, %arg2: memref<16x1xi32, #tpu.memory_space<vmem>>, %arg3: memref<16x1xf32, #tpu.memory_space<vmem>>, %arg4: memref<1x128xf32, #tpu.memory_space<vmem>>, %arg5: memref<16x32xbf16, #tpu.memory_space<vmem>>, %arg6: memref<128x32xbf16, #tpu.memory_space<vmem>>, %arg7: memref<16x128xf32, #tpu.memory_space<vmem>>) attributes {dimension_semantics = [#tpu.dimension_semantics<parallel>, #tpu.dimension_semantics<parallel>], iteration_bounds = array<i64: 1, 2>, scalar_prefetch = 0 : i64, scratch_operands = 0 : i64, tpu.core_type = #tpu.core_type<tc>, window_params = [{transform_indices = @transform_0, window_bounds = array<i64: 16, 1>}, {transform_indices = @transform_1, window_bounds = array<i64: 16, 1>}, {transform_indices = @transform_2, window_bounds = array<i64: 1, 128>}, {transform_indices = @transform_3, window_bounds = array<i64: 16, 32>}, {transform_indices = @transform_4, window_bounds = array<i64: 128, 32>}, {transform_indices = @transform_5, window_bounds = array<i64: 16, 128>}]} {
    %c0 = arith.constant 0 : index
    %c0_0 = arith.constant 0 : index
    %0 = vector.load %arg5[%c0, %c0_0] : memref<16x32xbf16, #tpu.memory_space<vmem>>, vector<16x32xbf16>
    %c0_1 = arith.constant 0 : index
    %c0_2 = arith.constant 0 : index
    %1 = vector.load %arg6[%c0_1, %c0_2] : memref<128x32xbf16, #tpu.memory_space<vmem>>, vector<128x32xbf16>
    %cst = arith.constant dense<0.000000e+00> : vector<16x128xf32>
    %2 = tpu.matmul %0, %1, %cst {dimension_numbers = #tpu.dot_dimension_numbers<[1], [1], [0], [0], [0, 0, 1, 0], [], []>} : vector<16x32xbf16>, vector<128x32xbf16>, vector<16x128xf32> -> vector<16x128xf32>
    %c0_3 = arith.constant 0 : index
    %c0_4 = arith.constant 0 : index
    %3 = vector.load %arg3[%c0_3, %c0_4] : memref<16x1xf32, #tpu.memory_space<vmem>>, vector<16x1xf32>
    %4 = vector.broadcast %3 : vector<16x1xf32> to vector<16x128xf32>
    %5 = arith.mulf %2, %4 : vector<16x128xf32>
    %c0_5 = arith.constant 0 : index
    %c0_6 = arith.constant 0 : index
    %6 = vector.load %arg4[%c0_5, %c0_6] : memref<1x128xf32, #tpu.memory_space<vmem>>, vector<1x128xf32>
    %7 = vector.broadcast %6 : vector<1x128xf32> to vector<16x128xf32>
    %8 = arith.mulf %5, %7 : vector<16x128xf32>
    %c0_7 = arith.constant 0 : index
    %c0_8 = arith.constant 0 : index
    %9 = vector.load %arg2[%c0_7, %c0_8] : memref<16x1xi32, #tpu.memory_space<vmem>>, vector<16x1xi32>
    %c128_i32 = arith.constant 128 : i32
    %10 = arith.muli %arg1, %c128_i32 : i32
    %11 = vector.broadcast %10 : i32 to vector<16x1xi32>
    %12 = arith.subi %9, %11 : vector<16x1xi32>
    %13 = tpu.iota {dimensions = array<i32: 1>} : vector<16x128xi32>
    %14 = vector.broadcast %12 : vector<16x1xi32> to vector<16x128xi32>
    %15 = arith.cmpi eq, %13, %14 : vector<16x128xi32>
    %cst_9 = arith.constant 1.200000e+01 : f32
    %16 = vector.broadcast %cst_9 : f32 to vector<16x128xf32>
    %17 = arith.subf %8, %16 : vector<16x128xf32>
    %18 = arith.select %15, %17, %8 : vector<16x128xi1>, vector<16x128xf32>
    %c0_10 = arith.constant 0 : index
    %c0_11 = arith.constant 0 : index
    %19 = vector.load %arg7[%c0_10, %c0_11] : memref<16x128xf32, #tpu.memory_space<vmem>>, vector<16x128xf32>
    tpu.vector_store %arg7[%c0_10, %c0_11], %18 {strides = array<i32>} : memref<16x128xf32, #tpu.memory_space<vmem>>, vector<16x128xf32>,
    return
  }
  func.func @transform_0(%arg0: i32, %arg1: i32) -> (i32, i32) {
    %c0_i32 = arith.constant 0 : i32
    %c0_i32_0 = arith.constant 0 : i32
    return %arg0, %c0_i32 : i32, i32
  }
  func.func @transform_1(%arg0: i32, %arg1: i32) -> (i32, i32) {
    %c0_i32 = arith.constant 0 : i32
    %c0_i32_0 = arith.constant 0 : i32
    return %arg0, %c0_i32 : i32, i32
  }
  func.func @transform_2(%arg0: i32, %arg1: i32) -> (i32, i32) {
    %c0_i32 = arith.constant 0 : i32
    %c0_i32_0 = arith.constant 0 : i32
    return %c0_i32, %arg1 : i32, i32
  }
  func.func @transform_3(%arg0: i32, %arg1: i32) -> (i32, i32) {
    %c0_i32 = arith.constant 0 : i32
    %c0_i32_0 = arith.constant 0 : i32
    return %arg0, %c0_i32 : i32, i32
  }
  func.func @transform_4(%arg0: i32, %arg1: i32) -> (i32, i32) {
    %c0_i32 = arith.constant 0 : i32
    %c0_i32_0 = arith.constant 0 : i32
    return %arg1, %c0_i32 : i32, i32
  }
  func.func @transform_5(%arg0: i32, %arg1: i32) -> (i32, i32) {
    %c0_i32 = arith.constant 0 : i32
    return %arg0, %arg1 : i32, i32
  }
}

</mosaic_0001>

<llo_original>
// kernel: tpu_custom_call.1
$region0: #{tpu_custom_call.1}
  #allocation0 [shape = 'u32[]', space=smem, size = 0x4, offset = 0x4, fixed_abs, tag = 'smem constant byte address 0x4 - core index']
  #allocation1 [shape = 'u32[144,128]{1,0:T(1,128)}', space=vmem, size = 0x12000, scoped, tag = 'internal scratch']
  %s0 = inlined_call_operand.vmem [shape: s32[16,1], index: 0, kind: input, shape index: {}]
  %s1 = inlined_call_operand.vmem [shape: f32[16,1], index: 1, kind: input, shape index: {}]
  %s2 = inlined_call_operand.vmem [shape: f32[1,256], index: 2, kind: input, shape index: {}]
  %s3 = inlined_call_operand.vmem [shape: bf16[16,32], index: 3, kind: input, shape index: {}]
  %s4 = inlined_call_operand.vmem [shape: bf16[256,32], index: 4, kind: input, shape index: {}]
  %s5 = inlined_call_operand.hbm [shape: f32[16,256], index: 5, kind: output, shape index: {}]
  %s6 = sld [smem:[#allocation0]]
  $region53: #{tpu_custom_call.1} parent=0
    _
  %s8 = ssub.s32 1, %s6
  %s9 = scalar_select 0, %s8, %s6
  $region1: #{tpu_custom_call.1} parent=0
    #allocation2 [shape = 'u8[16384]{0}', space=vmem, size = 0x4000, scoped, tag = 'output window, operand 0']
    #allocation3 [shape = 's32[2]{0}', space=sflag, size = 0x8, scoped, tag = 'scoped memory for tpu_custom_call.1']
    %10 = vsyncpa [#allocation3], 0
    %s11 = scalar_lea.sflag [#allocation3], 1
    %12 = vsyncpa %s11, 0
    loop: start=0, step=1, limit=4
    $region2: #{tpu_custom_call.1} parent=1 // loop_pre_header
      _
    $region3: #{tpu_custom_call.1} parent=1 // loop_header
      %s14 = sphi 0, %s18
      %p15 = scmp.ge.s32.totalorder %s14, 4
      %s21 = sphi 0, %s33
      %s22 = sphi 0, %s29
      %s23 = sphi 0, %s21
      %s24 = sphi 0, %s22
      %s25 = sphi 0, %s23
      %s26 = sphi 0, %s24
      %s36 = sphi 0, %s38
      %s39 = sphi 0, %s36
      %s40 = sphi 0, %s39
      %s56 = sphi 0, %s40
      %s62 = sphi 0, %s64
      %s65 = sphi 0, %s62
      %s66 = sphi 0, %s65
      %s82 = sphi 0, %s66
      %s88 = sphi 0, %s90
      %s91 = sphi 0, %s88
      %s92 = sphi 0, %s91
      %s108 = sphi 0, %s92
      %s114 = sphi 0, %s116
      %s117 = sphi 0, %s114
      %s118 = sphi 0, %s117
      %s134 = sphi 0, %s118
      %s140 = sphi 0, %s142
      %s143 = sphi 0, %s140
      %s144 = sphi 0, %s143
      %s160 = sphi 0, %s144
      %s168 = sphi 0, %s170
      %s171 = sphi 0, %s168
      %s172 = sphi 0, %s171
      %s188 = sphi 0, %s172
    $region4: #{tpu_custom_call.1} parent=1 // loop_header_branch
      %17 = sbr.rel (%p15) target = $region8
    $region5: #{tpu_custom_call.1} parent=1 // loop_body
      %s19 = ssub.s32 %s14, 1
      %s20 = ssub.s32 %s14, 2
      %s27 = sadd.s32 1, %s22
      %p28 = scmp.ge.s32.totalorder %s27, 2
      %s29 = scalar_select %p28, 0, %s27
      %s30 = sadd.s32 1, %s21
      %s31 = scalar_select %p28, %s30, %s21
      %p32 = scmp.ge.s32.totalorder %s31, 1
      %s33 = scalar_select %p32, 0, %s31
      %s34 = ssub.s32 %s21, %s33
      %p35 = scmp.eq.s32.totalorder %s34, 0
      %s37 = sadd.s32 %s36, 1
      %s38 = scalar_select %p35, %s36, %s37
      %p41 = pneg %p35
      %p42 = scmp.eq.s32.totalorder %s14, 1
      %p43 = por %p41, %p42
      %p44 = scmp.ne.s32.totalorder %s36, %s39
      %p45 = scmp.eq.s32.totalorder %s14, 0
      %p46 = por %p44, %p45
      %p47 = scmp.ne.s32.totalorder %s36, %s39
      %p48 = scmp.eq.s32.totalorder %s19, 1
      %p49 = por %p47, %p48
      %p50 = scmp.ne.s32.totalorder %s39, %s40
      %p51 = scmp.eq.s32.totalorder %s19, 0
      %p52 = por %p50, %p51
      %p53 = scmp.ne.s32.totalorder %s39, %s40
      %p54 = scmp.eq.s32.totalorder %s20, 1
      %p55 = por %p53, %p54
      %p57 = scmp.ne.s32.totalorder %s40, %s56
      %p58 = scmp.eq.s32.totalorder %s20, 0
      %p59 = por %p57, %p58
      %s60 = ssub.s32 %s21, %s33
      %p61 = scmp.eq.s32.totalorder %s60, 0
      %s63 = sadd.s32 %s62, 1
      %s64 = scalar_select %p61, %s62, %s63
      %p67 = pneg %p61
      %p68 = scmp.eq.s32.totalorder %s14, 1
      %p69 = por %p67, %p68
      %p70 = scmp.ne.s32.totalorder %s62, %s65
      %p71 = scmp.eq.s32.totalorder %s14, 0
      %p72 = por %p70, %p71
      %p73 = scmp.ne.s32.totalorder %s62, %s65
      %p74 = scmp.eq.s32.totalorder %s19, 1
      %p75 = por %p73, %p74
      %p76 = scmp.ne.s32.totalorder %s65, %s66
      %p77 = scmp.eq.s32.totalorder %s19, 0
      %p78 = por %p76, %p77
      %p79 = scmp.ne.s32.totalorder %s65, %s66
      %p80 = scmp.eq.s32.totalorder %s20, 1
      %p81 = por %p79, %p80
      %p83 = scmp.ne.s32.totalorder %s66, %s82
      %p84 = scmp.eq.s32.totalorder %s20, 0
      %p85 = por %p83, %p84
      %s86 = ssub.s32 %s22, %s29
      %p87 = scmp.eq.s32.totalorder %s86, 0
      %s89 = sadd.s32 %s88, 1
      %s90 = scalar_select %p87, %s88, %s89
      %p93 = pneg %p87
      %p94 = scmp.eq.s32.totalorder %s14, 1
      %p95 = por %p93, %p94
      %p96 = scmp.ne.s32.totalorder %s88, %s91
      %p97 = scmp.eq.s32.totalorder %s14, 0
      %p98 = por %p96, %p97
      %p99 = scmp.ne.s32.totalorder %s88, %s91
      %p100 = scmp.eq.s32.totalorder %s19, 1
      %p101 = por %p99, %p100
      %p102 = scmp.ne.s32.totalorder %s91, %s92
      %p103 = scmp.eq.s32.totalorder %s19, 0
      %p104 = por %p102, %p103
      %p105 = scmp.ne.s32.totalorder %s91, %s92
      %p106 = scmp.eq.s32.totalorder %s20, 1
      %p107 = por %p105, %p106
      %p109 = scmp.ne.s32.totalorder %s92, %s108
      %p110 = scmp.eq.s32.totalorder %s20, 0
      %p111 = por %p109, %p110
      %s112 = ssub.s32 %s21, %s33
      %p113 = scmp.eq.s32.totalorder %s112, 0
      %s115 = sadd.s32 %s114, 1
      %s116 = scalar_select %p113, %s114, %s115
      %p119 = pneg %p113
      %p120 = scmp.eq.s32.totalorder %s14, 1
      %p121 = por %p119, %p120
      %p122 = scmp.ne.s32.totalorder %s114, %s117
      %p123 = scmp.eq.s32.totalorder %s14, 0
      %p124 = por %p122, %p123
      %p125 = scmp.ne.s32.totalorder %s114, %s117
      %p126 = scmp.eq.s32.totalorder %s19, 1
      %p127 = por %p125, %p126
      %p128 = scmp.ne.s32.totalorder %s117, %s118
      %p129 = scmp.eq.s32.totalorder %s19, 0
      %p130 = por %p128, %p129
      %p131 = scmp.ne.s32.totalorder %s117, %s118
      %p132 = scmp.eq.s32.totalorder %s20, 1
      %p133 = por %p131, %p132
      %p135 = scmp.ne.s32.totalorder %s118, %s134
      %p136 = scmp.eq.s32.totalorder %s20, 0
      %p137 = por %p135, %p136
      %s138 = ssub.s32 %s22, %s29
      %p139 = scmp.eq.s32.totalorder %s138, 0
      %s141 = sadd.s32 %s140, 1
      %s142 = scalar_select %p139, %s140, %s141
      %p145 = pneg %p139
      %p146 = scmp.eq.s32.totalorder %s14, 1
      %p147 = por %p145, %p146
      %p148 = scmp.ne.s32.totalorder %s140, %s143
      %p149 = scmp.eq.s32.totalorder %s14, 0
      %p150 = por %p148, %p149
      %p151 = scmp.ne.s32.totalorder %s140, %s143
      %p152 = scmp.eq.s32.totalorder %s19, 1
      %p153 = por %p151, %p152
      %p154 = scmp.ne.s32.totalorder %s143, %s144
      %p155 = scmp.eq.s32.totalorder %s19, 0
      %p156 = por %p154, %p155
      %p157 = scmp.ne.s32.totalorder %s143, %s144
      %p158 = scmp.eq.s32.totalorder %s20, 1
      %p159 = por %p157, %p158
      %p161 = scmp.ne.s32.totalorder %s144, %s160
      %p162 = scmp.eq.s32.totalorder %s20, 0
      %p163 = por %p161, %p162
      %s164 = ssub.s32 %s21, %s33
      %s165 = ssub.s32 %s22, %s29
      %s166 = sor.u32 %s164, %s165
      %p167 = scmp.eq.s32.totalorder %s166, 0
      %s169 = sadd.s32 %s168, 1
      %s170 = scalar_select %p167, %s168, %s169
      %p173 = pneg %p167
      %p174 = scmp.eq.s32.totalorder %s14, 1
      %p175 = por %p173, %p174
      %p176 = scmp.ne.s32.totalorder %s168, %s171
      %p177 = scmp.eq.s32.totalorder %s14, 0
      %p178 = por %p176, %p177
      %p179 = scmp.ne.s32.totalorder %s168, %s171
      %p180 = scmp.eq.s32.totalorder %s19, 1
      %p181 = por %p179, %p180
      %p182 = scmp.ne.s32.totalorder %s171, %s172
      %p183 = scmp.eq.s32.totalorder %s19, 0
      %p184 = por %p182, %p183
      %p185 = scmp.ne.s32.totalorder %s171, %s172
      %p186 = scmp.eq.s32.totalorder %s20, 1
      %p187 = por %p185, %p186
      %p189 = scmp.ne.s32.totalorder %s172, %s188
      %p190 = scmp.eq.s32.totalorder %s20, 0
      %p191 = por %p189, %p190
      %p192 = scmp.le.s32.totalorder 1, %s14
      %p193 = scmp.lt.s32.totalorder %s14, 3
      %p194 = pnand %p192, %p193
      %p195 = pneg %p194
      // Predicated region
      $region9: #{tpu_custom_call.1} parent=5 // pred_check
        _
      $region10: #{tpu_custom_call.1} parent=5 // pred_check_branch
        %197 = sbr.rel (%p194) target = $region12
      $region11: #{tpu_custom_call.1} parent=5 // pred_region
        %s198 = ssub.s32 %s14, 1
        // Predicated region
        $region13: #{tpu_custom_call.1} parent=11 // pred_check
          %p199 = pneg %p52
        $region14: #{tpu_custom_call.1} parent=11 // pred_check_branch
          %201 = sbr.rel (%p199) target = $region16
        $region15: #{tpu_custom_call.1} parent=11 // pred_region
          %s202 = smul.u32 2, %s23
          %p203 = scmp.lt.s32.totalorder %s202, 1
          %s204 = scalar_select %p203, %s202, 1
          %s205 = smul.addr %s204, 8
          %s206 = scalar_lea.vmem %s0, %s205
          %s207 = smul.u32 2, %s23
        $region16: #{tpu_custom_call.1} parent=11 // pred_fallthru
          _
        // Predicated region
        $region17: #{tpu_custom_call.1} parent=11 // pred_check
          %p208 = pneg %p78
        $region18: #{tpu_custom_call.1} parent=11 // pred_check_branch
          %210 = sbr.rel (%p208) target = $region20
        $region19: #{tpu_custom_call.1} parent=11 // pred_region
          %s211 = smul.u32 2, %s23
          %p212 = scmp.lt.s32.totalorder %s211, 1
          %s213 = scalar_select %p212, %s211, 1
          %s214 = smul.addr %s213, 8
          %s215 = scalar_lea.vmem %s1, %s214
          %s216 = smul.u32 2, %s23
        $region20: #{tpu_custom_call.1} parent=11 // pred_fallthru
          _
        // Predicated region
        $region21: #{tpu_custom_call.1} parent=11 // pred_check
          %p217 = pneg %p130
        $region22: #{tpu_custom_call.1} parent=11 // pred_check_branch
          %219 = sbr.rel (%p217) target = $region24
        $region23: #{tpu_custom_call.1} parent=11 // pred_region
          %s220 = smul.u32 2, %s23
          %p221 = scmp.lt.s32.totalorder %s220, 1
          %s222 = scalar_select %p221, %s220, 1
          %s223 = smul.addr %s222, 4
          %s224 = scalar_lea.vmem %s3, %s223
          %s225 = smul.u32 2, %s23
        $region24: #{tpu_custom_call.1} parent=11 // pred_fallthru
          _
      $region12: #{tpu_custom_call.1} parent=5 // pred_fallthru
        _
      %p226 = scmp.lt.s32.totalorder %s14, 2
      // Predicated region
      $region25: #{tpu_custom_call.1} parent=5 // pred_check
        %p227 = pneg %p226
      $region26: #{tpu_custom_call.1} parent=5 // pred_check_branch
        %229 = sbr.rel (%p227) target = $region28
      $region27: #{tpu_custom_call.1} parent=5 // pred_region
        // Predicated region
        $region29: #{tpu_custom_call.1} parent=27 // pred_check
          %p230 = pneg %p98
        $region30: #{tpu_custom_call.1} parent=27 // pred_check_branch
          %232 = sbr.rel (%p230) target = $region32
        $region31: #{tpu_custom_call.1} parent=27 // pred_region
          %p233 = scmp.lt.s32.totalorder %s22, 1
          %s234 = scalar_select %p233, %s22, 1
          %s235 = scalar_lea.vmem %s2, %s234
        $region32: #{tpu_custom_call.1} parent=27 // pred_fallthru
          _
        // Predicated region
        $region33: #{tpu_custom_call.1} parent=27 // pred_check
          %p236 = pneg %p150
        $region34: #{tpu_custom_call.1} parent=27 // pred_check_branch
          %238 = sbr.rel (%p236) target = $region36
        $region35: #{tpu_custom_call.1} parent=27 // pred_region
          %s239 = smul.u32 16, %s22
          %p240 = scmp.lt.s32.totalorder %s239, 31
          %s241 = scalar_select %p240, %s239, 31
          %s242 = smul.addr %s241, 4
          %s243 = scalar_lea.vmem %s4, %s242
          %s244 = smul.u32 16, %s22
        $region36: #{tpu_custom_call.1} parent=27 // pred_fallthru
          _
      $region28: #{tpu_custom_call.1} parent=5 // pred_fallthru
        _
      %p245 = scmp.le.s32.totalorder 1, %s14
      %p246 = scmp.lt.s32.totalorder %s14, 3
      %p247 = pnand %p245, %p246
      %p248 = pneg %p247
      // Predicated region
      $region37: #{tpu_custom_call.1} parent=5 // pred_check
        _
      $region38: #{tpu_custom_call.1} parent=5 // pred_check_branch
        %250 = sbr.rel (%p247) target = $region40
      $region39: #{tpu_custom_call.1} parent=5 // pred_region
        %s251 = ssub.s32 %s14, 1
        %s252 = smul.u32 2, %s23
        %p253 = scmp.lt.s32.totalorder %s252, 1
        %s254 = scalar_select %p253, %s252, 1
        %s255 = smul.addr %s254, 8
        %s256 = scalar_lea.vmem %s0, %s255
        %p257 = pneg %p52
        %p258 = pneg %p49
        %s259 = smul.u32 2, %s23
        %p260 = scmp.lt.s32.totalorder %s259, 1
        %s261 = scalar_select %p260, %s259, 1
        %s262 = smul.addr %s261, 8
        %s263 = scalar_lea.vmem %s1, %s262
        %p264 = pneg %p78
        %p265 = pneg %p75
        %p266 = scmp.lt.s32.totalorder %s24, 1
        %s267 = scalar_select %p266, %s24, 1
        %s268 = scalar_lea.vmem %s2, %s267
        %p269 = pneg %p104
        %p270 = pneg %p101
        %s271 = smul.u32 2, %s23
        %p272 = scmp.lt.s32.totalorder %s271, 1
        %s273 = scalar_select %p272, %s271, 1
        %s274 = smul.addr %s273, 4
        %s275 = scalar_lea.vmem %s3, %s274
        %p276 = pneg %p130
        %p277 = pneg %p127
        %s278 = smul.u32 16, %s24
        %p279 = scmp.lt.s32.totalorder %s278, 31
        %s280 = scalar_select %p279, %s278, 31
        %s281 = smul.addr %s280, 4
        %s282 = scalar_lea.vmem %s4, %s281
        %p283 = pneg %p156
        %p284 = pneg %p153
        %p285 = pneg %p184
        %p286 = pneg %p181
        %s287 = sand.u32 %s171, 1
        %s288 = scalar_lea.sflag [#allocation3], %s287
        %s289 = sand.u32 %s171, 1
        %s290 = smul.addr %s289, 16
        %s291 = scalar_lea.vmem [#allocation2], %s290
        %s292 = smul.u32 2, %s23
        %p293 = scmp.lt.s32.totalorder %s292, 1
        %s294 = scalar_select %p293, %s292, 1
        %s295 = smul.addr %s294, 8
        %s296 = scalar_lea.vmem %s0, %s295
        %s297 = smul.u32 2, %s23
        %s298 = smul.u32 2, %s23
        %p299 = scmp.lt.s32.totalorder %s298, 1
        %s300 = scalar_select %p299, %s298, 1
        %s301 = smul.addr %s300, 8
        %s302 = scalar_lea.vmem %s1, %s301
        %s303 = smul.u32 2, %s23
        %p304 = scmp.lt.s32.totalorder %s24, 1
        %s305 = scalar_select %p304, %s24, 1
        %s306 = scalar_lea.vmem %s2, %s305
        %s307 = smul.u32 2, %s23
        %p308 = scmp.lt.s32.totalorder %s307, 1
        %s309 = scalar_select %p308, %s307, 1
        %s310 = smul.addr %s309, 4
        %s311 = scalar_lea.vmem %s3, %s310
        %s312 = smul.u32 2, %s23
        %s313 = smul.u32 16, %s24
        %p314 = scmp.lt.s32.totalorder %s313, 31
        %s315 = scalar_select %p314, %s313, 31
        %s316 = smul.addr %s315, 4
        %s317 = scalar_lea.vmem %s4, %s316
        %s318 = smul.u32 16, %s24
        %s319 = smul.u32 2, %s23
        %v321 = vld [vmem:[%s311] sm:$0xf]
        %v322 = vld [vmem:[%s311 + $0x4] sm:$0xf]
        %v323 = vld [vmem:[%s317] sm:$0xf]
        %v324 = vld [vmem:[%s317 + $0x4] sm:$0xf]
        %v325 = vld [vmem:[%s317 + $0x8] sm:$0xf]
        %v326 = vld [vmem:[%s317 + $0xc] sm:$0xf]
        %v327 = vld [vmem:[%s317 + $0x10] sm:$0xf]
        %v328 = vld [vmem:[%s317 + $0x14] sm:$0xf]
        %v329 = vld [vmem:[%s317 + $0x18] sm:$0xf]
        %v330 = vld [vmem:[%s317 + $0x1c] sm:$0xf]
        %v331 = vld [vmem:[%s317 + $0x20] sm:$0xf]
        %v332 = vld [vmem:[%s317 + $0x24] sm:$0xf]
        %v333 = vld [vmem:[%s317 + $0x28] sm:$0xf]
        %v334 = vld [vmem:[%s317 + $0x2c] sm:$0xf]
        %v335 = vld [vmem:[%s317 + $0x30] sm:$0xf]
        %v336 = vld [vmem:[%s317 + $0x34] sm:$0xf]
        %v337 = vld [vmem:[%s317 + $0x38] sm:$0xf]
        %v338 = vld [vmem:[%s317 + $0x3c] sm:$0xf]
        %v341 = vunpack.c.l.b16 %v321
        %v342 = vunpack.c.l.b16 %v322
        %v343 = vpack.c.b16 %v342, %v341
        %v360 = vunpack.c.l.b16 %v323
        %v361 = vunpack.c.l.b16 %v324
        %v362 = vunpack.c.l.b16 %v325
        %v363 = vunpack.c.l.b16 %v326
        %v364 = vunpack.c.l.b16 %v327
        %v365 = vunpack.c.l.b16 %v328
        %v366 = vunpack.c.l.b16 %v329
        %v367 = vunpack.c.l.b16 %v330
        %v368 = vunpack.c.l.b16 %v331
        %v369 = vunpack.c.l.b16 %v332
        %v370 = vunpack.c.l.b16 %v333
        %v371 = vunpack.c.l.b16 %v334
        %v372 = vunpack.c.l.b16 %v335
        %v373 = vunpack.c.l.b16 %v336
        %v374 = vunpack.c.l.b16 %v337
        %v375 = vunpack.c.l.b16 %v338
        %v376 = vpack.c.b16 %v361, %v360
        %v377 = vpack.c.b16 %v363, %v362
        %v378 = vpack.c.b16 %v365, %v364
        %v379 = vpack.c.b16 %v367, %v366
        %v380 = vpack.c.b16 %v369, %v368
        %v381 = vpack.c.b16 %v371, %v370
        %v382 = vpack.c.b16 %v373, %v372
        %v383 = vpack.c.b16 %v375, %v374
        %vm384 = vcmask 261120
        %v386 = vsel %vm384, %v343, 0
        %v389 = vsel %vm384, %v376, 0
        %v392 = vsel %vm384, %v377, 0
        %v395 = vsel %vm384, %v378, 0
        %v398 = vsel %vm384, %v379, 0
        %v401 = vsel %vm384, %v380, 0
        %v404 = vsel %vm384, %v381, 0
        %v407 = vsel %vm384, %v382, 0
        %v410 = vsel %vm384, %v383, 0
        %412 = vmatprep.subr.bf16.mxu0 0
        %413 = vmatpush1.bf16.xpose.msra.mxu0 %v410
        %414 = vmatprep.subr.bf16.mxu0 0
        %415 = vmatpush1.bf16.xpose.msra.mxu0 %v407
        %416 = vmatprep.subr.bf16.mxu0 0
        %417 = vmatpush1.bf16.xpose.msra.mxu0 %v404
        %418 = vmatprep.subr.bf16.mxu0 0
        %419 = vmatpush1.bf16.xpose.msra.mxu0 %v401
        %420 = vmatprep.subr.bf16.mxu0 0
        %421 = vmatpush1.bf16.xpose.msra.mxu0 %v398
        %422 = vmatprep.subr.bf16.mxu0 0
        %423 = vmatpush1.bf16.xpose.msra.mxu0 %v395
        %424 = vmatprep.subr.bf16.mxu0 0
        %425 = vmatpush1.bf16.xpose.msra.mxu0 %v392
        %426 = vmatprep.subr.bf16.mxu0 0
        %427 = vmatpush1.bf16.xpose.msra.mxu0 %v389
        %428 = vmatprep.subr.bf16.mxu0 0
        %429 = vmatpush2.bf16.xpose.msra.mxu0 0
        %430 = vmatprep.subr.bf16.mxu0 0
        %431 = vmatpush2.bf16.xpose.msra.mxu0 0
        %432 = vmatprep.subr.bf16.mxu0 0
        %433 = vmatpush2.bf16.xpose.msra.mxu0 0
        %434 = vmatprep.subr.bf16.mxu0 0
        %435 = vmatpush2.bf16.xpose.msra.mxu0 0
        %436 = vmatprep.subr.bf16.mxu0 0
        %437 = vmatpush2.bf16.xpose.msra.mxu0 0
        %438 = vmatprep.subr.bf16.mxu0 0
        %439 = vmatpush2.bf16.xpose.msra.mxu0 0
        %440 = vmatprep.subr.bf16.mxu0 0
        %441 = vmatpush2.bf16.xpose.msra.mxu0 0
        %442 = vmatprep.subr.bf16.mxu0 0
        %443 = vmatpush2.bf16.xpose.msra.mxu0 0
        %444 = vmatprep.mubr.bf16.mxu0 0
        %445 = vmatmul.mubr.bf16.gmra.mxu0 %v386
        %v446 = vpop.f32.mrf.mxu0
        %v447 = vadd.f32 0.0, %v446
        %v448 = vpop.f32.mrf.mxu0
        %v449 = vpop.f32.mrf.mxu0
        %v450 = vadd.f32 0.0, %v449
        %v451 = vpop.f32.mrf.mxu0
        %452 = vdwg.mxu0
        %v453 = vld [vmem:[%s302] sm:$0xff]
        %v454 = vld [vmem:[%s302 + $0x8] sm:$0xff]
        %456 = vset.pattern.permute.xlu0 0
        %457 = vperm.xlu0 %456, %v453
        %v458 = vpop.permute.xlu0 %457
        %461 = vset.pattern.permute.xlu0 0
        %462 = vperm.xlu0 %461, %v454
        %v463 = vpop.permute.xlu0 %462
        %v465 = vmul.f32 %v447, %v458
        %v466 = vmul.f32 %v450, %v463
        %v467 = vld [vmem:[%s306] sm:$0x1]
        %v469 = vlaneseq
        %v470 = vshrl.u32 %v469, 7
        %v471 = vsub.s32 0, %v470
        %v472 = vrot.slane %v467, %v471
        %v474 = vmul.f32 %v465, %v472
        %v475 = vmul.f32 %v466, %v472
        %v476 = vld [vmem:[%s296] sm:$0xff]
        %v477 = vld [vmem:[%s296 + $0x8] sm:$0xff]
        %s478 = smul.u32 %s24, 128
        %v479 = vstv %s478
        %v480 = vsub.s32 %v476, %v479
        %v481 = vsub.s32 %v477, %v479
        %v482 = vlaneseq
        %v483 = vand.u32 %v482, 127
        %484 = vset.pattern.permute.xlu0 0
        %485 = vperm.xlu0 %484, %v480
        %v486 = vpop.permute.xlu0 %485
        %487 = vset.pattern.permute.xlu0 0
        %488 = vperm.xlu0 %487, %v481
        %v489 = vpop.permute.xlu0 %488
        %vm490 = vcmp.eq.s32.totalorder %v483, %v486
        %vm491 = vcmp.eq.s32.totalorder %v483, %v489
        %v492 = vsub.f32 %v474, 12.0
        %v493 = vsub.f32 %v475, 12.0
        %v494 = vsel %vm490, %v492, %v474
        %v495 = vsel %vm491, %v493, %v475
        %496 = vst [vmem:[%s291] sm:$0xff] %v494
        %497 = vst [vmem:[%s291 + $0x8] sm:$0xff] %v495
        %s498 = sand.u32 %s171, 1
        %s499 = scalar_lea.sflag [#allocation3], %s498
        %s500 = sand.u32 %s171, 1
        %s501 = smul.addr %s500, 16
        %s502 = scalar_lea.vmem [#allocation2], %s501
        // Predicated region
        $region41: #{tpu_custom_call.1} parent=39 // pred_check
          %p503 = pneg %p181
        $region42: #{tpu_custom_call.1} parent=39 // pred_check_branch
          %505 = sbr.rel (%p503) target = $region44
        $region43: #{tpu_custom_call.1} parent=39 // pred_region
          %s506 = smul.u32 2, %s23
          %s508 = ssub.s32 256, 256
          %509 = vsyncadd %s499, %s508
          %s510 = smul.addr %s506, 2
          %s511 = sadd.s32 %s24, %s510
          %s512 = smul.addr %s511, 128
          %s513 = scalar_lea.hbm %s5, %s512
          %s514 = sshll.u32 %s502, 4
          %s515 = int_to_ptr.vmem [resolvable:$true] %s514
          %520 = dma.vmem_to_hbm [thread:$0]  %s515, 256, %s513, %s499, 128, 256, 8
        $region44: #{tpu_custom_call.1} parent=39 // pred_fallthru
          _
      $region40: #{tpu_custom_call.1} parent=5 // pred_fallthru
        _
      %p521 = scmp.le.s32.totalorder 2, %s14
      // Predicated region
      $region45: #{tpu_custom_call.1} parent=5 // pred_check
        %p522 = pneg %p521
      $region46: #{tpu_custom_call.1} parent=5 // pred_check_branch
        %524 = sbr.rel (%p522) target = $region48
      $region47: #{tpu_custom_call.1} parent=5 // pred_region
        %s525 = ssub.s32 %s14, 2
        // Predicated region
        $region49: #{tpu_custom_call.1} parent=47 // pred_check
          %p526 = pneg %p187
        $region50: #{tpu_custom_call.1} parent=47 // pred_check_branch
          %528 = sbr.rel (%p526) target = $region52
        $region51: #{tpu_custom_call.1} parent=47 // pred_region
          %s529 = sand.u32 %s172, 1
          %s530 = scalar_lea.sflag [#allocation3], %s529
          %s531 = sand.u32 %s172, 1
          %s532 = smul.addr %s531, 16
          %s533 = scalar_lea.vmem [#allocation2], %s532
          %534 = dma.done %s530, 256
        $region52: #{tpu_custom_call.1} parent=47 // pred_fallthru
          _
      $region48: #{tpu_custom_call.1} parent=5 // pred_fallthru
        _
    $region6: #{tpu_custom_call.1} parent=1 // loop_footer
      %s18 = sadd.s32 1, %s14
    $region7: #{tpu_custom_call.1} parent=1 // loop_footer_branch
      %13 = sbr.rel target = $region3
    $region8: #{tpu_custom_call.1} parent=1 // loop_exit
      _
    %535 = vsyncpa [#allocation3], 1
    %s536 = scalar_lea.sflag [#allocation3], 1
    %537 = vsyncpa %s536, 1

</llo_original>
